<compile_context>
chip_gen: v7x
topology: tpu7x:2x2x1
jax: 0.10.0
libtpu: 0.0.40
codegen_flags: <defaults>
</compile_context>

<pallas_src>
import jax
import jax.numpy as jnp
import numpy as np
from jax.experimental import pallas as pl
from jax.experimental.pallas import tpu as pltpu

IN_FEATURES = 4
OUT_FEATURES = 4
N_HIDDEN = [32, 32]
PROD_FEATURES = IN_FEATURES * (IN_FEATURES + 3) // 2  # 14

# torch.triu_indices(F, F, offset=0) ordering: row-major over the upper triangle
TRIU_PAIRS = [(i, j) for i in range(IN_FEATURES) for j in range(IN_FEATURES) if j >= i]


def _make_selection_constants():
    """Constant matrices so that OuterProductLayer(x) == (L@x) * (R@x + c).

    Feature f < IN_FEATURES        : L picks x_f, R row is zero, c_f = 1  -> x_f
    Feature f = IN_FEATURES + k    : L picks x_i, R picks x_j, c_f = 0    -> x_i * x_j
    (transposed layout: x is (IN_FEATURES, TB))
    """
    L = np.zeros((PROD_FEATURES, IN_FEATURES), np.float32)
    R = np.zeros((PROD_FEATURES, IN_FEATURES), np.float32)
    c = np.zeros((PROD_FEATURES, 1), np.float32)
    for f in range(IN_FEATURES):            # pass-through features
        L[f, f] = 1.0
        c[f, 0] = 1.0
    for k, (i, j) in enumerate(TRIU_PAIRS):  # pairwise products
        f = IN_FEATURES + k
        L[f, i] = 1.0
        R[f, j] = 1.0
    return jnp.asarray(L), jnp.asarray(R), jnp.asarray(c)


SEL_L, SEL_R, SEL_C = _make_selection_constants()


def _round_up(n, m):
    return ((n + m - 1) // m) * m


def mlp_kernel(x_ref, lsel_ref, rsel_ref, cvec_ref,
               w0_ref, b0_ref, w1_ref, b1_ref,
               wy_ref, by_ref, wg_ref, bg_ref, o_ref):
    # Batch-on-lanes layout: x is (IN_FEATURES, TB), all activations (feat, TB).
    x = x_ref[...]                                                    # (4, TB)

    # --- OuterProductLayer via two constant selection matmuls + one VPU mul ---
    a = jnp.dot(lsel_ref[...], x, preferred_element_type=jnp.float32)              # (14, TB)
    b = jnp.dot(rsel_ref[...], x, preferred_element_type=jnp.float32) + cvec_ref[...]
    h = jnp.maximum(a * b, 0.0)     # ReLU after products (activation_after_products)

    # --- hidden Linear layers + ReLU (weights stored torch-style: (out, in)) ---
    h = jnp.maximum(
        jnp.dot(w0_ref[...], h, preferred_element_type=jnp.float32) + b0_ref[...], 0.0)  # (32, TB)
    h = jnp.maximum(
        jnp.dot(w1_ref[...], h, preferred_element_type=jnp.float32) + b1_ref[...], 0.0)  # (32, TB)

    # --- final Linear split into y / gate halves (no sub-tile slicing) ---
    y = jnp.dot(wy_ref[...], h, preferred_element_type=jnp.float32) + by_ref[...]        # (4, TB)
    g = jnp.dot(wg_ref[...], h, preferred_element_type=jnp.float32) + bg_ref[...]        # (4, TB)

    # --- gate: y * (1 - exp(-g*g)); lane-dense store (TB multiple of 128) ---
    o_ref[...] = y * (1.0 - jnp.exp(-g * g))


def mlp_forward(x, params, tb_max=512):
    """x: (B, IN_FEATURES) f32.  params: [W0,b0,W1,b1,W2,b2] with W (out,in), b (out,1)."""
    B = x.shape[0]
    w0, b0, w1, b1, w2, b2 = params
    # Split the gated last layer so y and g come from separate dots.
    wy, wg = w2[:OUT_FEATURES], w2[OUT_FEATURES:]
    by, bg = b2[:OUT_FEATURES], b2[OUT_FEATURES:]

    # Batch tile: lane-aligned (multiple of 128), capped at tb_max.  Even
    # TB=2048 is < 100 KiB of double-buffered VMEM here, far under the 32 MiB
    # scoped default on every generation (v7x included).
    TB = min(tb_max, _round_up(B, 128))
    B_pad = _round_up(B, TB)
    xt = jnp.pad(x.T, ((0, 0), (0, B_pad - B)))            # (IN_FEATURES, B_pad)

    args = (xt, SEL_L, SEL_R, SEL_C, w0, b0, w1, b1, wy, by, wg, bg)

    def const_spec(a):
        # Full-array block, constant block index -> DMA'd once, VMEM-resident.
        return pl.BlockSpec(a.shape, lambda i: (0,) * a.ndim)

    in_specs = [pl.BlockSpec((IN_FEATURES, TB), lambda i: (0, i))]
    in_specs += [const_spec(a) for a in args[1:]]

    out = pl.pallas_call(
        mlp_kernel,
        out_shape=jax.ShapeDtypeStruct((OUT_FEATURES, B_pad), jnp.float32),
        grid=(B_pad // TB,),
        in_specs=in_specs,
        out_specs=pl.BlockSpec((OUT_FEATURES, TB), lambda i: (0, i)),
        compiler_params=pltpu.CompilerParams(dimension_semantics=("parallel",)),
    )(*args)
    return out[:, :B].T                                    # back to (B, OUT_FEATURES)


def init_params(key):
    """Deterministic Linear params (uniform +-1/sqrt(fan_in), like nn.Linear default).

    Stored in torch layout: W (out, in), b (out, 1)."""
    dims_in = [PROD_FEATURES] + N_HIDDEN                   # 14, 32, 32
    dims_out = N_HIDDEN + [2 * OUT_FEATURES]               # 32, 32, 8 (gate doubles last)
    params = []
    for din, dout in zip(dims_in, dims_out):
        key, kw, kb = jax.random.split(key, 3)
        bound = 1.0 / (din ** 0.5)
        W = jax.random.uniform(kw, (dout, din), jnp.float32, -bound, bound)
        b = jax.random.uniform(kb, (dout, 1), jnp.float32, -bound, bound)
        params += [W, b]
    return params


def ref_forward(x, params):
    """Pure-JAX reference mirroring the PyTorch forward (batch, feature layout)."""
    prods = jnp.stack([x[:, i] * x[:, j] for (i, j) in TRIU_PAIRS], axis=1)
    h = jnp.concatenate([x, prods], axis=1)
    h = jnp.maximum(h, 0.0)
    w0, b0, w1, b1, w2, b2 = params
    h = jnp.maximum(h @ w0.T + b0[:, 0], 0.0)
    h = jnp.maximum(h @ w1.T + b1[:, 0], 0.0)
    z = h @ w2.T + b2[:, 0]
    y, g = z[:, :OUT_FEATURES], z[:, OUT_FEATURES:]
    return y * (1.0 - jnp.exp(-g * g))


if __name__ == "__main__":
    key = jax.random.PRNGKey(0)
    kx, kp = jax.random.split(key)
    params = init_params(kp)

    # Two cases: tiny batch (single padded block) and a batch that exercises a
    # multi-step grid plus padding of a non-multiple tail (384 = 3 * 128).
    for batch in (8, 384):
        x = jax.random.normal(jax.random.fold_in(kx, batch),
                              (batch, IN_FEATURES), dtype=jnp.float32)
        out = jax.block_until_ready(mlp_forward(x, params, tb_max=128))
        ref = ref_forward(x, params)
        assert out.shape == (batch, OUT_FEATURES)
        assert jnp.allclose(out, ref, atol=1e-4, rtol=1e-4)

    print("KERNEL_OK")
</pallas_src>

<mosaic_0001>
module attributes {stable_mosaic.version = 11 : i64} {
  func.func @mlp_kernel(%arg0: i32, %arg1: memref<4x128xf32, #tpu.memory_space<vmem>>, %arg2: memref<14x4xf32, #tpu.memory_space<vmem>>, %arg3: memref<14x4xf32, #tpu.memory_space<vmem>>, %arg4: memref<14x1xf32, #tpu.memory_space<vmem>>, %arg5: memref<32x14xf32, #tpu.memory_space<vmem>>, %arg6: memref<32x1xf32, #tpu.memory_space<vmem>>, %arg7: memref<32x32xf32, #tpu.memory_space<vmem>>, %arg8: memref<32x1xf32, #tpu.memory_space<vmem>>, %arg9: memref<4x32xf32, #tpu.memory_space<vmem>>, %arg10: memref<4x1xf32, #tpu.memory_space<vmem>>, %arg11: memref<4x32xf32, #tpu.memory_space<vmem>>, %arg12: memref<4x1xf32, #tpu.memory_space<vmem>>, %arg13: memref<4x128xf32, #tpu.memory_space<vmem>>) attributes {dimension_semantics = [#tpu.dimension_semantics<parallel>], iteration_bounds = array<i64: 1>, scalar_prefetch = 0 : i64, scratch_operands = 0 : i64, tpu.core_type = #tpu.core_type<tc>, window_params = [{transform_indices = @transform_0, window_bounds = array<i64: 4, 128>}, {pipeline_mode = #tpu.pipeline_mode<synchronous>, transform_indices = @transform_1, window_bounds = array<i64: 14, 4>}, {pipeline_mode = #tpu.pipeline_mode<synchronous>, transform_indices = @transform_2, window_bounds = array<i64: 14, 4>}, {pipeline_mode = #tpu.pipeline_mode<synchronous>, transform_indices = @transform_3, window_bounds = array<i64: 14, 1>}, {pipeline_mode = #tpu.pipeline_mode<synchronous>, transform_indices = @transform_4, window_bounds = array<i64: 32, 14>}, {pipeline_mode = #tpu.pipeline_mode<synchronous>, transform_indices = @transform_5, window_bounds = array<i64: 32, 1>}, {pipeline_mode = #tpu.pipeline_mode<synchronous>, transform_indices = @transform_6, window_bounds = array<i64: 32, 32>}, {pipeline_mode = #tpu.pipeline_mode<synchronous>, transform_indices = @transform_7, window_bounds = array<i64: 32, 1>}, {pipeline_mode = #tpu.pipeline_mode<synchronous>, transform_indices = @transform_8, window_bounds = array<i64: 4, 32>}, {pipeline_mode = #tpu.pipeline_mode<synchronous>, transform_indices = @transform_9, window_bounds = array<i64: 4, 1>}, {pipeline_mode = #tpu.pipeline_mode<synchronous>, transform_indices = @transform_10, window_bounds = array<i64: 4, 32>}, {pipeline_mode = #tpu.pipeline_mode<synchronous>, transform_indices = @transform_11, window_bounds = array<i64: 4, 1>}, {transform_indices = @transform_12, window_bounds = array<i64: 4, 128>}]} {
    %c0 = arith.constant 0 : index
    %c0_0 = arith.constant 0 : index
    %0 = vector.load %arg1[%c0, %c0_0] : memref<4x128xf32, #tpu.memory_space<vmem>>, vector<4x128xf32>
    %c0_1 = arith.constant 0 : index
    %c0_2 = arith.constant 0 : index
    %1 = vector.load %arg2[%c0_1, %c0_2] : memref<14x4xf32, #tpu.memory_space<vmem>>, vector<14x4xf32>
    %cst = arith.constant dense<0.000000e+00> : vector<14x128xf32>
    %2 = tpu.matmul %1, %0, %cst {dimension_numbers = #tpu.dot_dimension_numbers<[1], [0], [0], [1], [0, 0, 1, 1], [], []>} : vector<14x4xf32>, vector<4x128xf32>, vector<14x128xf32> -> vector<14x128xf32>
    %c0_3 = arith.constant 0 : index
    %c0_4 = arith.constant 0 : index
    %3 = vector.load %arg3[%c0_3, %c0_4] : memref<14x4xf32, #tpu.memory_space<vmem>>, vector<14x4xf32>
    %cst_5 = arith.constant dense<0.000000e+00> : vector<14x128xf32>
    %4 = tpu.matmul %3, %0, %cst_5 {dimension_numbers = #tpu.dot_dimension_numbers<[1], [0], [0], [1], [0, 0, 1, 1], [], []>} : vector<14x4xf32>, vector<4x128xf32>, vector<14x128xf32> -> vector<14x128xf32>
    %c0_6 = arith.constant 0 : index
    %c0_7 = arith.constant 0 : index
    %5 = vector.load %arg4[%c0_6, %c0_7] : memref<14x1xf32, #tpu.memory_space<vmem>>, vector<14x1xf32>
    %6 = vector.broadcast %5 : vector<14x1xf32> to vector<14x128xf32>
    %7 = arith.addf %4, %6 : vector<14x128xf32>
    %8 = arith.mulf %2, %7 : vector<14x128xf32>
    %cst_8 = arith.constant 0.000000e+00 : f32
    %9 = vector.broadcast %cst_8 : f32 to vector<14x128xf32>
    %10 = arith.maximumf %8, %9 : vector<14x128xf32>
    %c0_9 = arith.constant 0 : index
    %c0_10 = arith.constant 0 : index
    %11 = vector.load %arg5[%c0_9, %c0_10] : memref<32x14xf32, #tpu.memory_space<vmem>>, vector<32x14xf32>
    %cst_11 = arith.constant dense<0.000000e+00> : vector<32x128xf32>
    %12 = tpu.matmul %11, %10, %cst_11 {dimension_numbers = #tpu.dot_dimension_numbers<[1], [0], [0], [1], [0, 0, 1, 1], [], []>} : vector<32x14xf32>, vector<14x128xf32>, vector<32x128xf32> -> vector<32x128xf32>
    %c0_12 = arith.constant 0 : index
    %c0_13 = arith.constant 0 : index
    %13 = vector.load %arg6[%c0_12, %c0_13] : memref<32x1xf32, #tpu.memory_space<vmem>>, vector<32x1xf32>
    %14 = vector.broadcast %13 : vector<32x1xf32> to vector<32x128xf32>
    %15 = arith.addf %12, %14 : vector<32x128xf32>
    %cst_14 = arith.constant 0.000000e+00 : f32
    %16 = vector.broadcast %cst_14 : f32 to vector<32x128xf32>
    %17 = arith.maximumf %15, %16 : vector<32x128xf32>
    %c0_15 = arith.constant 0 : index
    %c0_16 = arith.constant 0 : index
    %18 = vector.load %arg7[%c0_15, %c0_16] : memref<32x32xf32, #tpu.memory_space<vmem>>, vector<32x32xf32>
    %cst_17 = arith.constant dense<0.000000e+00> : vector<32x128xf32>
    %19 = tpu.matmul %18, %17, %cst_17 {dimension_numbers = #tpu.dot_dimension_numbers<[1], [0], [0], [1], [0, 0, 1, 1], [], []>} : vector<32x32xf32>, vector<32x128xf32>, vector<32x128xf32> -> vector<32x128xf32>
    %c0_18 = arith.constant 0 : index
    %c0_19 = arith.constant 0 : index
    %20 = vector.load %arg8[%c0_18, %c0_19] : memref<32x1xf32, #tpu.memory_space<vmem>>, vector<32x1xf32>
    %21 = vector.broadcast %20 : vector<32x1xf32> to vector<32x128xf32>
    %22 = arith.addf %19, %21 : vector<32x128xf32>
    %cst_20 = arith.constant 0.000000e+00 : f32
    %23 = vector.broadcast %cst_20 : f32 to vector<32x128xf32>
    %24 = arith.maximumf %22, %23 : vector<32x128xf32>
    %c0_21 = arith.constant 0 : index
    %c0_22 = arith.constant 0 : index
    %25 = vector.load %arg9[%c0_21, %c0_22] : memref<4x32xf32, #tpu.memory_space<vmem>>, vector<4x32xf32>
    %cst_23 = arith.constant dense<0.000000e+00> : vector<4x128xf32>
    %26 = tpu.matmul %25, %24, %cst_23 {dimension_numbers = #tpu.dot_dimension_numbers<[1], [0], [0], [1], [0, 0, 1, 1], [], []>} : vector<4x32xf32>, vector<32x128xf32>, vector<4x128xf32> -> vector<4x128xf32>
    %c0_24 = arith.constant 0 : index
    %c0_25 = arith.constant 0 : index
    %27 = vector.load %arg10[%c0_24, %c0_25] : memref<4x1xf32, #tpu.memory_space<vmem>>, vector<4x1xf32>
    %28 = vector.broadcast %27 : vector<4x1xf32> to vector<4x128xf32>
    %29 = arith.addf %26, %28 : vector<4x128xf32>
    %c0_26 = arith.constant 0 : index
    %c0_27 = arith.constant 0 : index
    %30 = vector.load %arg11[%c0_26, %c0_27] : memref<4x32xf32, #tpu.memory_space<vmem>>, vector<4x32xf32>
    %cst_28 = arith.constant dense<0.000000e+00> : vector<4x128xf32>
    %31 = tpu.matmul %30, %24, %cst_28 {dimension_numbers = #tpu.dot_dimension_numbers<[1], [0], [0], [1], [0, 0, 1, 1], [], []>} : vector<4x32xf32>, vector<32x128xf32>, vector<4x128xf32> -> vector<4x128xf32>
    %c0_29 = arith.constant 0 : index
    %c0_30 = arith.constant 0 : index
    %32 = vector.load %arg12[%c0_29, %c0_30] : memref<4x1xf32, #tpu.memory_space<vmem>>, vector<4x1xf32>
    %33 = vector.broadcast %32 : vector<4x1xf32> to vector<4x128xf32>
    %34 = arith.addf %31, %33 : vector<4x128xf32>
    %cst_31 = arith.constant 0.000000e+00 : f32
    %35 = vector.broadcast %cst_31 : f32 to vector<4x128xf32>
    %36 = arith.subf %35, %34 : vector<4x128xf32>
    %37 = arith.mulf %36, %34 : vector<4x128xf32>
    %38 = math.exp %37 : vector<4x128xf32>
    %cst_32 = arith.constant 1.000000e+00 : f32
    %39 = vector.broadcast %cst_32 : f32 to vector<4x128xf32>
    %40 = arith.subf %39, %38 : vector<4x128xf32>
    %41 = arith.mulf %29, %40 : vector<4x128xf32>
    %c0_33 = arith.constant 0 : index
    %c0_34 = arith.constant 0 : index
    %42 = vector.load %arg13[%c0_33, %c0_34] : memref<4x128xf32, #tpu.memory_space<vmem>>, vector<4x128xf32>
    tpu.vector_store %arg13[%c0_33, %c0_34], %41 {strides = array<i32>} : memref<4x128xf32, #tpu.memory_space<vmem>>, vector<4x128xf32>,
    return
  }
  func.func @transform_0(%arg0: i32) -> (i32, i32) {
    %c0_i32 = arith.constant 0 : i32
    %c0_i32_0 = arith.constant 0 : i32
    return %c0_i32, %arg0 : i32, i32
  }
  func.func @transform_1(%arg0: i32) -> (i32, i32) {
    %c0_i32 = arith.constant 0 : i32
    %c0_i32_0 = arith.constant 0 : i32
    %c0_i32_1 = arith.constant 0 : i32
    return %c0_i32, %c0_i32_0 : i32, i32
  }
  func.func @transform_2(%arg0: i32) -> (i32, i32) {
    %c0_i32 = arith.constant 0 : i32
    %c0_i32_0 = arith.constant 0 : i32
    %c0_i32_1 = arith.constant 0 : i32
    return %c0_i32, %c0_i32_0 : i32, i32
  }
  func.func @transform_3(%arg0: i32) -> (i32, i32) {
    %c0_i32 = arith.constant 0 : i32
    %c0_i32_0 = arith.constant 0 : i32
    %c0_i32_1 = arith.constant 0 : i32
    return %c0_i32, %c0_i32_0 : i32, i32
  }
  func.func @transform_4(%arg0: i32) -> (i32, i32) {
    %c0_i32 = arith.constant 0 : i32
    %c0_i32_0 = arith.constant 0 : i32
    %c0_i32_1 = arith.constant 0 : i32
    return %c0_i32, %c0_i32_0 : i32, i32
  }
  func.func @transform_5(%arg0: i32) -> (i32, i32) {
    %c0_i32 = arith.constant 0 : i32
    %c0_i32_0 = arith.constant 0 : i32
    %c0_i32_1 = arith.constant 0 : i32
    return %c0_i32, %c0_i32_0 : i32, i32
  }
  func.func @transform_6(%arg0: i32) -> (i32, i32) {
    %c0_i32 = arith.constant 0 : i32
    %c0_i32_0 = arith.constant 0 : i32
    %c0_i32_1 = arith.constant 0 : i32
    return %c0_i32, %c0_i32_0 : i32, i32
  }
  func.func @transform_7(%arg0: i32) -> (i32, i32) {
    %c0_i32 = arith.constant 0 : i32
    %c0_i32_0 = arith.constant 0 : i32
    %c0_i32_1 = arith.constant 0 : i32
    return %c0_i32, %c0_i32_0 : i32, i32
  }
  func.func @transform_8(%arg0: i32) -> (i32, i32) {
    %c0_i32 = arith.constant 0 : i32
    %c0_i32_0 = arith.constant 0 : i32
    %c0_i32_1 = arith.constant 0 : i32
    return %c0_i32, %c0_i32_0 : i32, i32
  }
  func.func @transform_9(%arg0: i32) -> (i32, i32) {
    %c0_i32 = arith.constant 0 : i32
    %c0_i32_0 = arith.constant 0 : i32
    %c0_i32_1 = arith.constant 0 : i32
    return %c0_i32, %c0_i32_0 : i32, i32
  }
  func.func @transform_10(%arg0: i32) -> (i32, i32) {
    %c0_i32 = arith.constant 0 : i32
    %c0_i32_0 = arith.constant 0 : i32
    %c0_i32_1 = arith.constant 0 : i32
    return %c0_i32, %c0_i32_0 : i32, i32
  }
  func.func @transform_11(%arg0: i32) -> (i32, i32) {
    %c0_i32 = arith.constant 0 : i32
    %c0_i32_0 = arith.constant 0 : i32
    %c0_i32_1 = arith.constant 0 : i32
    return %c0_i32, %c0_i32_0 : i32, i32
  }
  func.func @transform_12(%arg0: i32) -> (i32, i32) {
    %c0_i32 = arith.constant 0 : i32
    %c0_i32_0 = arith.constant 0 : i32
    return %c0_i32, %arg0 : i32, i32
  }
}

</mosaic_0001>

<llo_original>
// kernel: tpu_custom_call.1
$region0: #{tpu_custom_call.1}
  #allocation0 [shape = 'u32[]', space=smem, size = 0x4, offset = 0x4, fixed_abs, tag = 'smem constant byte address 0x4 - core index']
  #allocation1 [shape = 'u32[144,128]{1,0:T(1,128)}', space=vmem, size = 0x12000, scoped, tag = 'internal scratch']
  %s0 = inlined_call_operand.vmem [shape: f32[4,128], index: 0, kind: input, shape index: {}]
  %s1 = inlined_call_operand.vmem [shape: f32[14,4], index: 1, kind: input, shape index: {}]
  %s2 = inlined_call_operand.vmem [shape: f32[14,4], index: 2, kind: input, shape index: {}]
  %s3 = inlined_call_operand.vmem [shape: f32[14,1], index: 3, kind: input, shape index: {}]
  %s4 = inlined_call_operand.vmem [shape: f32[32,14], index: 4, kind: input, shape index: {}]
  %s5 = inlined_call_operand.vmem [shape: f32[32,1], index: 5, kind: input, shape index: {}]
  %s6 = inlined_call_operand.vmem [shape: f32[32,32], index: 6, kind: input, shape index: {}]
  %s7 = inlined_call_operand.vmem [shape: f32[32,1], index: 7, kind: input, shape index: {}]
  %s8 = inlined_call_operand.vmem [shape: f32[4,32], index: 8, kind: input, shape index: {}]
  %s9 = inlined_call_operand.vmem [shape: f32[4,1], index: 9, kind: input, shape index: {}]
  %s10 = inlined_call_operand.vmem [shape: f32[4,32], index: 10, kind: input, shape index: {}]
  %s11 = inlined_call_operand.vmem [shape: f32[4,1], index: 11, kind: input, shape index: {}]
  %s12 = inlined_call_operand.hbm [shape: f32[4,128], index: 12, kind: output, shape index: {}]
  %s13 = sld [smem:[#allocation0]]
  $region58: #{tpu_custom_call.1} parent=0
    _
  %s15 = ssub.s32 1, %s13
  %s16 = scalar_select 0, %s15, %s13
  $region1: #{tpu_custom_call.1} parent=0
    #allocation2 [shape = 'u8[2048]{0}', space=vmem, size = 0x800, scoped, tag = 'output window, operand 0, single buffered']
    #allocation3 [shape = 's32[1]{0}', space=sflag, size = 0x4, scoped, tag = 'scoped memory for tpu_custom_call.1']
    %17 = vsyncpa [#allocation3], 0
    // Predicated region
    $region2: #{tpu_custom_call.1} parent=1 // pred_check
      _
    $region3: #{tpu_custom_call.1} parent=1 // pred_check_branch
      %19 = sbr.rel (0) target = $region5
    $region4: #{tpu_custom_call.1} parent=1 // pred_region
      _
    $region5: #{tpu_custom_call.1} parent=1 // pred_fallthru
      _
    // Predicated region
    $region6: #{tpu_custom_call.1} parent=1 // pred_check
      _
    $region7: #{tpu_custom_call.1} parent=1 // pred_check_branch
      %21 = sbr.rel (0) target = $region9
    $region8: #{tpu_custom_call.1} parent=1 // pred_region
      _
    $region9: #{tpu_custom_call.1} parent=1 // pred_fallthru
      _
    // Predicated region
    $region10: #{tpu_custom_call.1} parent=1 // pred_check
      _
    $region11: #{tpu_custom_call.1} parent=1 // pred_check_branch
      %23 = sbr.rel (0) target = $region13
    $region12: #{tpu_custom_call.1} parent=1 // pred_region
      _
    $region13: #{tpu_custom_call.1} parent=1 // pred_fallthru
      _
    // Predicated region
    $region14: #{tpu_custom_call.1} parent=1 // pred_check
      _
    $region15: #{tpu_custom_call.1} parent=1 // pred_check_branch
      %25 = sbr.rel (0) target = $region17
    $region16: #{tpu_custom_call.1} parent=1 // pred_region
      _
    $region17: #{tpu_custom_call.1} parent=1 // pred_fallthru
      _
    // Predicated region
    $region18: #{tpu_custom_call.1} parent=1 // pred_check
      _
    $region19: #{tpu_custom_call.1} parent=1 // pred_check_branch
      %27 = sbr.rel (0) target = $region21
    $region20: #{tpu_custom_call.1} parent=1 // pred_region
      _
    $region21: #{tpu_custom_call.1} parent=1 // pred_fallthru
      _
    // Predicated region
    $region22: #{tpu_custom_call.1} parent=1 // pred_check
      _
    $region23: #{tpu_custom_call.1} parent=1 // pred_check_branch
      %29 = sbr.rel (0) target = $region25
    $region24: #{tpu_custom_call.1} parent=1 // pred_region
      _
    $region25: #{tpu_custom_call.1} parent=1 // pred_fallthru
      _
    // Predicated region
    $region26: #{tpu_custom_call.1} parent=1 // pred_check
      _
    $region27: #{tpu_custom_call.1} parent=1 // pred_check_branch
      %31 = sbr.rel (0) target = $region29
    $region28: #{tpu_custom_call.1} parent=1 // pred_region
      _
    $region29: #{tpu_custom_call.1} parent=1 // pred_fallthru
      _
    // Predicated region
    $region30: #{tpu_custom_call.1} parent=1 // pred_check
      _
    $region31: #{tpu_custom_call.1} parent=1 // pred_check_branch
      %33 = sbr.rel (0) target = $region33
    $region32: #{tpu_custom_call.1} parent=1 // pred_region
      _
    $region33: #{tpu_custom_call.1} parent=1 // pred_fallthru
      _
    // Predicated region
    $region34: #{tpu_custom_call.1} parent=1 // pred_check
      _
    $region35: #{tpu_custom_call.1} parent=1 // pred_check_branch
      %35 = sbr.rel (0) target = $region37
    $region36: #{tpu_custom_call.1} parent=1 // pred_region
      _
    $region37: #{tpu_custom_call.1} parent=1 // pred_fallthru
      _
    // Predicated region
    $region38: #{tpu_custom_call.1} parent=1 // pred_check
      _
    $region39: #{tpu_custom_call.1} parent=1 // pred_check_branch
      %37 = sbr.rel (0) target = $region41
    $region40: #{tpu_custom_call.1} parent=1 // pred_region
      _
    $region41: #{tpu_custom_call.1} parent=1 // pred_fallthru
      _
    // Predicated region
    $region42: #{tpu_custom_call.1} parent=1 // pred_check
      _
    $region43: #{tpu_custom_call.1} parent=1 // pred_check_branch
      %39 = sbr.rel (0) target = $region45
    $region44: #{tpu_custom_call.1} parent=1 // pred_region
      _
    $region45: #{tpu_custom_call.1} parent=1 // pred_fallthru
      _
    // Predicated region
    $region46: #{tpu_custom_call.1} parent=1 // pred_check
      _
    $region47: #{tpu_custom_call.1} parent=1 // pred_check_branch
      %41 = sbr.rel (0) target = $region49
    $region48: #{tpu_custom_call.1} parent=1 // pred_region
      _
    $region49: #{tpu_custom_call.1} parent=1 // pred_fallthru
      _
    %v42 = vld [vmem:[%s0] sm:$0xf]
    %v43 = vld [vmem:[%s1] sm:$0xff]
    %v44 = vld [vmem:[%s1 + $0x8] sm:$0x3f]
    %vm45 = vcmask 31744
    %v47 = vsel %vm45, %v43, 0
    %v50 = vsel %vm45, %v44, 0
    %vm52 = vcmask 1043456
    %v54 = vsel %vm52, %v42, 0
    %56 = vmatprep.subr.mxu0 0.0
    %57 = vmatpush1.msra.mxu0 %v54
    %58 = vmatprep.subr.mxu0 0.0
    %59 = vmatpush1.msra.mxu0 0.0
    %60 = vmatprep.subr.mxu0 0.0
    %61 = vmatpush1.msra.mxu0 0.0
    %62 = vmatprep.subr.mxu0 0.0
    %63 = vmatpush1.msra.mxu0 0.0
    %64 = vmatprep.subr.mxu0 0.0
    %65 = vmatpush1.msra.mxu0 0.0
    %66 = vmatprep.subr.mxu0 0.0
    %67 = vmatpush1.msra.mxu0 0.0
    %68 = vmatprep.subr.mxu0 0.0
    %69 = vmatpush1.msra.mxu0 0.0
    %70 = vmatprep.subr.mxu0 0.0
    %71 = vmatpush1.msra.mxu0 0.0
    %72 = vmatprep.subr.mxu0 0.0
    %73 = vmatpush1.msra.mxu0 0.0
    %74 = vmatprep.subr.mxu0 0.0
    %75 = vmatpush1.msra.mxu0 0.0
    %76 = vmatprep.subr.mxu0 0.0
    %77 = vmatpush1.msra.mxu0 0.0
    %78 = vmatprep.subr.mxu0 0.0
    %79 = vmatpush1.msra.mxu0 0.0
    %80 = vmatprep.subr.mxu0 0.0
    %81 = vmatpush1.msra.mxu0 0.0
    %82 = vmatprep.subr.mxu0 0.0
    %83 = vmatpush1.msra.mxu0 0.0
    %84 = vmatprep.subr.mxu0 0.0
    %85 = vmatpush1.msra.mxu0 0.0
    %86 = vmatprep.subr.mxu0 0.0
    %87 = vmatpush1.msra.mxu0 0.0
    %88 = vmatprep.subr.mxu0 0.0
    %89 = vmatpush1.msra.mxu0 0.0
    %90 = vmatprep.subr.mxu0 0.0
    %91 = vmatpush1.msra.mxu0 0.0
    %92 = vmatprep.subr.mxu0 0.0
    %93 = vmatpush1.msra.mxu0 0.0
    %94 = vmatprep.subr.mxu0 0.0
    %95 = vmatpush1.msra.mxu0 0.0
    %96 = vmatprep.subr.mxu0 0.0
    %97 = vmatpush1.msra.mxu0 0.0
    %98 = vmatprep.subr.mxu0 0.0
    %99 = vmatpush1.msra.mxu0 0.0
    %100 = vmatprep.subr.mxu0 0.0
    %101 = vmatpush1.msra.mxu0 0.0
    %102 = vmatprep.subr.mxu0 0.0
    %103 = vmatpush1.msra.mxu0 0.0
    %104 = vmatprep.subr.mxu0 0.0
    %105 = vmatpush1.msra.mxu0 0.0
    %106 = vmatprep.subr.mxu0 0.0
    %107 = vmatpush1.msra.mxu0 0.0
    %108 = vmatprep.subr.mxu0 0.0
    %109 = vmatpush1.msra.mxu0 0.0
    %110 = vmatprep.subr.mxu0 0.0
    %111 = vmatpush1.msra.mxu0 0.0
    %112 = vmatprep.subr.mxu0 0.0
    %113 = vmatpush1.msra.mxu0 0.0
    %114 = vmatprep.subr.mxu0 0.0
    %115 = vmatpush1.msra.mxu0 0.0
    %116 = vmatprep.subr.mxu0 0.0
    %117 = vmatpush1.msra.mxu0 0.0
    %118 = vmatprep.subr.mxu0 0.0
    %119 = vmatpush1.msra.mxu0 0.0
    %120 = vmatprep.mubr.f32.mxu0 0.0
    %121 = vmatmul.mubr.f32.gmra.mrb[0].mxu0 %v47
    %v122 = vpop.f32.mrb[0].mxu0
    %v123 = vadd.f32 0.0, %v122
    %v124 = vpop.f32.mrb[0].mxu0
    %125 = vmatprep.mubr.f32.mxu0 0.0
    %126 = vmatmul.mubr.f32.gmra.mrb[0].mxu0 %v50
    %v127 = vpop.f32.mrb[0].mxu0
    %v128 = vadd.f32 0.0, %v127
    %v129 = vpop.f32.mrb[0].mxu0
    %130 = vdwg.mxu0
    %v131 = vld [vmem:[%s2] sm:$0xff]
    %v132 = vld [vmem:[%s2 + $0x8] sm:$0x3f]
    %v133 = vld [vmem:[%s3] sm:$0xff]
    %v134 = vld [vmem:[%s3 + $0x8] sm:$0x3f]
    %136 = vset.pattern.permute.xlu0 0
    %137 = vperm.xlu0 %136, %v133
    %v138 = vpop.permute.xlu0 %137
    %141 = vset.pattern.permute.xlu0 0
    %142 = vperm.xlu0 %141, %v134
    %v143 = vpop.permute.xlu0 %142
    %v146 = vsel %vm45, %v131, 0
    %v149 = vsel %vm45, %v132, 0
    %151 = vmatprep.subr.mxu0 0.0
    %152 = vmatpush1.msra.mxu0 %v54
    %153 = vmatprep.subr.mxu0 0.0
    %154 = vmatpush1.msra.mxu0 0.0
    %155 = vmatprep.subr.mxu0 0.0
    %156 = vmatpush1.msra.mxu0 0.0
    %157 = vmatprep.subr.mxu0 0.0
    %158 = vmatpush1.msra.mxu0 0.0
    %159 = vmatprep.subr.mxu0 0.0
    %160 = vmatpush1.msra.mxu0 0.0
    %161 = vmatprep.subr.mxu0 0.0
    %162 = vmatpush1.msra.mxu0 0.0
    %163 = vmatprep.subr.mxu0 0.0
    %164 = vmatpush1.msra.mxu0 0.0
    %165 = vmatprep.subr.mxu0 0.0
    %166 = vmatpush1.msra.mxu0 0.0
    %167 = vmatprep.subr.mxu0 0.0
    %168 = vmatpush1.msra.mxu0 0.0
    %169 = vmatprep.subr.mxu0 0.0
    %170 = vmatpush1.msra.mxu0 0.0
    %171 = vmatprep.subr.mxu0 0.0
    %172 = vmatpush1.msra.mxu0 0.0
    %173 = vmatprep.subr.mxu0 0.0
    %174 = vmatpush1.msra.mxu0 0.0
    %175 = vmatprep.subr.mxu0 0.0
    %176 = vmatpush1.msra.mxu0 0.0
    %177 = vmatprep.subr.mxu0 0.0
    %178 = vmatpush1.msra.mxu0 0.0
    %179 = vmatprep.subr.mxu0 0.0
    %180 = vmatpush1.msra.mxu0 0.0
    %181 = vmatprep.subr.mxu0 0.0
    %182 = vmatpush1.msra.mxu0 0.0
    %183 = vmatprep.subr.mxu0 0.0
    %184 = vmatpush1.msra.mxu0 0.0
    %185 = vmatprep.subr.mxu0 0.0
    %186 = vmatpush1.msra.mxu0 0.0
    %187 = vmatprep.subr.mxu0 0.0
    %188 = vmatpush1.msra.mxu0 0.0
    %189 = vmatprep.subr.mxu0 0.0
    %190 = vmatpush1.msra.mxu0 0.0
    %191 = vmatprep.subr.mxu0 0.0
    %192 = vmatpush1.msra.mxu0 0.0
    %193 = vmatprep.subr.mxu0 0.0
    %194 = vmatpush1.msra.mxu0 0.0
    %195 = vmatprep.subr.mxu0 0.0
    %196 = vmatpush1.msra.mxu0 0.0
    %197 = vmatprep.subr.mxu0 0.0
    %198 = vmatpush1.msra.mxu0 0.0
    %199 = vmatprep.subr.mxu0 0.0
    %200 = vmatpush1.msra.mxu0 0.0
    %201 = vmatprep.subr.mxu0 0.0
    %202 = vmatpush1.msra.mxu0 0.0
    %203 = vmatprep.subr.mxu0 0.0
    %204 = vmatpush1.msra.mxu0 0.0
    %205 = vmatprep.subr.mxu0 0.0
    %206 = vmatpush1.msra.mxu0 0.0
    %207 = vmatprep.subr.mxu0 0.0
    %208 = vmatpush1.msra.mxu0 0.0
    %209 = vmatprep.subr.mxu0 0.0
    %210 = vmatpush1.msra.mxu0 0.0
    %211 = vmatprep.subr.mxu0 0.0
    %212 = vmatpush1.msra.mxu0 0.0
    %213 = vmatprep.subr.mxu0 0.0
    %214 = vmatpush1.msra.mxu0 0.0
    %215 = vmatprep.mubr.f32.mxu0 0.0
    %216 = vmatmul.mubr.f32.gmra.mrb[0].mxu0 %v146
    %v217 = vpop.f32.mrb[0].mxu0
    %v218 = vadd.f32 %v138, %v217
    %v219 = vpop.f32.mrb[0].mxu0
    %220 = vmatprep.mubr.f32.mxu0 0.0
    %221 = vmatmul.mubr.f32.gmra.mrb[0].mxu0 %v149
    %v222 = vpop.f32.mrb[0].mxu0
    %v223 = vadd.f32 %v143, %v222
    %v224 = vpop.f32.mrb[0].mxu0
    %225 = vdwg.mxu0
    %v226 = vmul.f32 %v123, %v218
    %v227 = vmul.f32 %v128, %v223
    %v228 = vmax.f32 %v226, 0.0
    %v229 = vmax.f32 %v227, 0.0
    %v230 = vld [vmem:[%s4] sm:$0xff]
    %v231 = vld [vmem:[%s4 + $0x8] sm:$0xff]
    %v232 = vld [vmem:[%s4 + $0x10] sm:$0xff]
    %v233 = vld [vmem:[%s4 + $0x18] sm:$0xff]
    %v234 = vld [vmem:[%s5] sm:$0xff]
    %v235 = vld [vmem:[%s5 + $0x8] sm:$0xff]
    %v236 = vld [vmem:[%s5 + $0x10] sm:$0xff]
    %v237 = vld [vmem:[%s5 + $0x18] sm:$0xff]
    %239 = vset.pattern.permute.xlu0 0
    %240 = vperm.xlu0 %239, %v234
    %v241 = vpop.permute.xlu0 %240
    %244 = vset.pattern.permute.xlu0 0
    %245 = vperm.xlu0 %244, %v235
    %v246 = vpop.permute.xlu0 %245
    %249 = vset.pattern.permute.xlu0 0
    %250 = vperm.xlu0 %249, %v236
    %v251 = vpop.permute.xlu0 %250
    %254 = vset.pattern.permute.xlu0 0
    %255 = vperm.xlu0 %254, %v237
    %v256 = vpop.permute.xlu0 %255
    %vm258 = vcmask 113664
    %v260 = vsel %vm258, %v230, 0
    %v263 = vsel %vm258, %v231, 0
    %v266 = vsel %vm258, %v232, 0
    %v269 = vsel %vm258, %v233, 0
    %vm271 = vcmask 1045504
    %v273 = vsel %vm271, %v229, 0
    %275 = vmatprep.subr.mxu0 0.0
    %276 = vmatpush1.msra.mxu0 %v228
    %277 = vmatprep.subr.mxu0 0.0
    %278 = vmatpush1.msra.mxu0 %v273
    %279 = vmatprep.subr.mxu0 0.0
    %280 = vmatpush1.msra.mxu0 0.0
    %281 = vmatprep.subr.mxu0 0.0
    %282 = vmatpush1.msra.mxu0 0.0
    %283 = vmatprep.subr.mxu0 0.0
    %284 = vmatpush1.msra.mxu0 0.0
    %285 = vmatprep.subr.mxu0 0.0
    %286 = vmatpush1.msra.mxu0 0.0
    %287 = vmatprep.subr.mxu0 0.0
    %288 = vmatpush1.msra.mxu0 0.0
    %289 = vmatprep.subr.mxu0 0.0
    %290 = vmatpush1.msra.mxu0 0.0
    %291 = vmatprep.subr.mxu0 0.0
    %292 = vmatpush1.msra.mxu0 0.0
    %293 = vmatprep.subr.mxu0 0.0
    %294 = vmatpush1.msra.mxu0 0.0
    %295 = vmatprep.subr.mxu0 0.0
    %296 = vmatpush1.msra.mxu0 0.0
    %297 = vmatprep.subr.mxu0 0.0
    %298 = vmatpush1.msra.mxu0 0.0
    %299 = vmatprep.subr.mxu0 0.0
    %300 = vmatpush1.msra.mxu0 0.0
    %301 = vmatprep.subr.mxu0 0.0
    %302 = vmatpush1.msra.mxu0 0.0
    %303 = vmatprep.subr.mxu0 0.0
    %304 = vmatpush1.msra.mxu0 0.0
    %305 = vmatprep.subr.mxu0 0.0
    %306 = vmatpush1.msra.mxu0 0.0
    %307 = vmatprep.subr.mxu0 0.0
    %308 = vmatpush1.msra.mxu0 0.0
    %309 = vmatprep.subr.mxu0 0.0
    %310 = vmatpush1.msra.mxu0 0.0
    %311 = vmatprep.subr.mxu0 0.0
    %312 = vmatpush1.msra.mxu0 0.0
    %313 = vmatprep.subr.mxu0 0.0
    %314 = vmatpush1.msra.mxu0 0.0
    %315 = vmatprep.subr.mxu0 0.0
    %316 = vmatpush1.msra.mxu0 0.0
    %317 = vmatprep.subr.mxu0 0.0
    %318 = vmatpush1.msra.mxu0 0.0
    %319 = vmatprep.subr.mxu0 0.0
    %320 = vmatpush1.msra.mxu0 0.0
    %321 = vmatprep.subr.mxu0 0.0
    %322 = vmatpush1.msra.mxu0 0.0
    %323 = vmatprep.subr.mxu0 0.0
    %324 = vmatpush1.msra.mxu0 0.0
    %325 = vmatprep.subr.mxu0 0.0
    %326 = vmatpush1.msra.mxu0 0.0
    %327 = vmatprep.subr.mxu0 0.0
    %328 = vmatpush1.msra.mxu0 0.0
    %329 = vmatprep.subr.mxu0 0.0
    %330 = vmatpush1.msra.mxu0 0.0
    %331 = vmatprep.subr.mxu0 0.0
    %332 = vmatpush1.msra.mxu0 0.0
    %333 = vmatprep.subr.mxu0 0.0
    %334 = vmatpush1.msra.mxu0 0.0
    %335 = vmatprep.subr.mxu0 0.0
    %336 = vmatpush1.msra.mxu0 0.0
    %337 = vmatprep.subr.mxu0 0.0
    %338 = vmatpush1.msra.mxu0 0.0
    %339 = vmatprep.mubr.f32.mxu0 0.0
    %340 = vmatmul.mubr.f32.gmra.mrb[0].mxu0 %v260
    %v341 = vpop.f32.mrb[0].mxu0
    %v342 = vadd.f32 %v241, %v341
    %v343 = vpop.f32.mrb[0].mxu0
    %344 = vmatprep.mubr.f32.mxu0 0.0
    %345 = vmatmul.mubr.f32.gmra.mrb[0].mxu0 %v263
    %v346 = vpop.f32.mrb[0].mxu0
    %v347 = vadd.f32 %v246, %v346
    %v348 = vpop.f32.mrb[0].mxu0
    %349 = vmatprep.mubr.f32.mxu0 0.0
    %350 = vmatmul.mubr.f32.gmra.mrb[0].mxu0 %v266
    %v351 = vpop.f32.mrb[0].mxu0
    %v352 = vadd.f32 %v251, %v351
    %v353 = vpop.f32.mrb[0].mxu0
    %354 = vmatprep.mubr.f32.mxu0 0.0
    %355 = vmatmul.mubr.f32.gmra.mrb[0].mxu0 %v269
    %v356 = vpop.f32.mrb[0].mxu0
    %v357 = vadd.f32 %v256, %v356
    %v358 = vpop.f32.mrb[0].mxu0
    %359 = vdwg.mxu0
    %v360 = vmax.f32 %v342, 0.0
    %v361 = vmax.f32 %v347, 0.0
    %v362 = vmax.f32 %v352, 0.0
    %v363 = vmax.f32 %v357, 0.0
    %v364 = vld [vmem:[%s6] sm:$0xff]
    %v365 = vld [vmem:[%s6 + $0x8] sm:$0xff]
    %v366 = vld [vmem:[%s6 + $0x10] sm:$0xff]
    %v367 = vld [vmem:[%s6 + $0x18] sm:$0xff]
    %v368 = vld [vmem:[%s7] sm:$0xff]
    %v369 = vld [vmem:[%s7 + $0x8] sm:$0xff]
    %v370 = vld [vmem:[%s7 + $0x10] sm:$0xff]
    %v371 = vld [vmem:[%s7 + $0x18] sm:$0xff]
    %373 = vset.pattern.permute.xlu0 0
    %374 = vperm.xlu0 %373, %v368
    %v375 = vpop.permute.xlu0 %374
    %378 = vset.pattern.permute.xlu0 0
    %379 = vperm.xlu0 %378, %v369
    %v380 = vpop.permute.xlu0 %379
    %383 = vset.pattern.permute.xlu0 0
    %384 = vperm.xlu0 %383, %v370
    %v385 = vpop.permute.xlu0 %384
    %388 = vset.pattern.permute.xlu0 0
    %389 = vperm.xlu0 %388, %v371
    %v390 = vpop.permute.xlu0 %389
    %vm392 = vcmask 261120
    %v394 = vsel %vm392, %v364, 0
    %v397 = vsel %vm392, %v365, 0
    %v400 = vsel %vm392, %v366, 0
    %v403 = vsel %vm392, %v367, 0
    %405 = vmatprep.subr.mxu0 0.0
    %406 = vmatpush1.msra.mxu0 %v360
    %407 = vmatprep.subr.mxu0 0.0
    %408 = vmatpush1.msra.mxu0 %v361
    %409 = vmatprep.subr.mxu0 0.0
    %410 = vmatpush1.msra.mxu0 %v362
    %411 = vmatprep.subr.mxu0 0.0
    %412 = vmatpush1.msra.mxu0 %v363
    %413 = vmatprep.subr.mxu0 0.0
    %414 = vmatpush1.msra.mxu0 0.0
    %415 = vmatprep.subr.mxu0 0.0
    %416 = vmatpush1.msra.mxu0 0.0
    %417 = vmatprep.subr.mxu0 0.0
    %418 = vmatpush1.msra.mxu0 0.0
    %419 = vmatprep.subr.mxu0 0.0
    %420 = vmatpush1.msra.mxu0 0.0
    %421 = vmatprep.subr.mxu0 0.0
    %422 = vmatpush1.msra.mxu0 0.0
    %423 = vmatprep.subr.mxu0 0.0
    %424 = vmatpush1.msra.mxu0 0.0
    %425 = vmatprep.subr.mxu0 0.0
    %426 = vmatpush1.msra.mxu0 0.0
    %427 = vmatprep.subr.mxu0 0.0
    %428 = vmatpush1.msra.mxu0 0.0
    %429 = vmatprep.subr.mxu0 0.0
    %430 = vmatpush1.msra.mxu0 0.0
    %431 = vmatprep.subr.mxu0 0.0
    %432 = vmatpush1.msra.mxu0 0.0
    %433 = vmatprep.subr.mxu0 0.0
    %434 = vmatpush1.msra.mxu0 0.0
    %435 = vmatprep.subr.mxu0 0.0
    %436 = vmatpush1.msra.mxu0 0.0
    %437 = vmatprep.subr.mxu0 0.0
    %438 = vmatpush1.msra.mxu0 0.0
    %439 = vmatprep.subr.mxu0 0.0
    %440 = vmatpush1.msra.mxu0 0.0
    %441 = vmatprep.subr.mxu0 0.0
    %442 = vmatpush1.msra.mxu0 0.0
    %443 = vmatprep.subr.mxu0 0.0
    %444 = vmatpush1.msra.mxu0 0.0
    %445 = vmatprep.subr.mxu0 0.0
    %446 = vmatpush1.msra.mxu0 0.0
    %447 = vmatprep.subr.mxu0 0.0
    %448 = vmatpush1.msra.mxu0 0.0
    %449 = vmatprep.subr.mxu0 0.0
    %450 = vmatpush1.msra.mxu0 0.0
    %451 = vmatprep.subr.mxu0 0.0
    %452 = vmatpush1.msra.mxu0 0.0
    %453 = vmatprep.subr.mxu0 0.0
    %454 = vmatpush1.msra.mxu0 0.0
    %455 = vmatprep.subr.mxu0 0.0
    %456 = vmatpush1.msra.mxu0 0.0
    %457 = vmatprep.subr.mxu0 0.0
    %458 = vmatpush1.msra.mxu0 0.0
    %459 = vmatprep.subr.mxu0 0.0
    %460 = vmatpush1.msra.mxu0 0.0
    %461 = vmatprep.subr.mxu0 0.0
    %462 = vmatpush1.msra.mxu0 0.0
    %463 = vmatprep.subr.mxu0 0.0
    %464 = vmatpush1.msra.mxu0 0.0
    %465 = vmatprep.subr.mxu0 0.0
    %466 = vmatpush1.msra.mxu0 0.0
    %467 = vmatprep.subr.mxu0 0.0
    %468 = vmatpush1.msra.mxu0 0.0
    %469 = vmatprep.mubr.f32.mxu0 0.0
    %470 = vmatmul.mubr.f32.gmra.mrb[0].mxu0 %v394
    %v471 = vpop.f32.mrb[0].mxu0
    %v472 = vadd.f32 %v375, %v471
    %v473 = vpop.f32.mrb[0].mxu0
    %474 = vmatprep.mubr.f32.mxu0 0.0
    %475 = vmatmul.mubr.f32.gmra.mrb[0].mxu0 %v397
    %v476 = vpop.f32.mrb[0].mxu0
    %v477 = vadd.f32 %v380, %v476
    %v478 = vpop.f32.mrb[0].mxu0
    %479 = vmatprep.mubr.f32.mxu0 0.0
    %480 = vmatmul.mubr.f32.gmra.mrb[0].mxu0 %v400
    %v481 = vpop.f32.mrb[0].mxu0
    %v482 = vadd.f32 %v385, %v481
    %v483 = vpop.f32.mrb[0].mxu0
    %484 = vmatprep.mubr.f32.mxu0 0.0
    %485 = vmatmul.mubr.f32.gmra.mrb[0].mxu0 %v403
    %v486 = vpop.f32.mrb[0].mxu0
    %v487 = vadd.f32 %v390, %v486
    %v488 = vpop.f32.mrb[0].mxu0
    %489 = vdwg.mxu0
    %v490 = vmax.f32 %v472, 0.0
    %v491 = vmax.f32 %v477, 0.0
    %v492 = vmax.f32 %v482, 0.0
    %v493 = vmax.f32 %v487, 0.0
    %v494 = vld [vmem:[%s8] sm:$0xf]
    %v495 = vld [vmem:[%s9] sm:$0xf]
    %497 = vset.pattern.permute.xlu0 0
    %498 = vperm.xlu0 %497, %v495
    %v499 = vpop.permute.xlu0 %498
    %v502 = vsel %vm392, %v494, 0
    %504 = vmatprep.subr.mxu0 0.0
    %505 = vmatpush1.msra.mxu0 %v490
    %506 = vmatprep.subr.mxu0 0.0
    %507 = vmatpush1.msra.mxu0 %v491
    %508 = vmatprep.subr.mxu0 0.0
    %509 = vmatpush1.msra.mxu0 %v492
    %510 = vmatprep.subr.mxu0 0.0
    %511 = vmatpush1.msra.mxu0 %v493
    %512 = vmatprep.subr.mxu0 0.0
    %513 = vmatpush1.msra.mxu0 0.0
    %514 = vmatprep.subr.mxu0 0.0
    %515 = vmatpush1.msra.mxu0 0.0
    %516 = vmatprep.subr.mxu0 0.0
    %517 = vmatpush1.msra.mxu0 0.0
    %518 = vmatprep.subr.mxu0 0.0
    %519 = vmatpush1.msra.mxu0 0.0
    %520 = vmatprep.subr.mxu0 0.0
    %521 = vmatpush1.msra.mxu0 0.0
    %522 = vmatprep.subr.mxu0 0.0
    %523 = vmatpush1.msra.mxu0 0.0
    %524 = vmatprep.subr.mxu0 0.0
    %525 = vmatpush1.msra.mxu0 0.0
    %526 = vmatprep.subr.mxu0 0.0
    %527 = vmatpush1.msra.mxu0 0.0
    %528 = vmatprep.subr.mxu0 0.0
    %529 = vmatpush1.msra.mxu0 0.0
    %530 = vmatprep.subr.mxu0 0.0
    %531 = vmatpush1.msra.mxu0 0.0
    %532 = vmatprep.subr.mxu0 0.0
    %533 = vmatpush1.msra.mxu0 0.0
    %534 = vmatprep.subr.mxu0 0.0
    %535 = vmatpush1.msra.mxu0 0.0
    %536 = vmatprep.subr.mxu0 0.0
    %537 = vmatpush1.msra.mxu0 0.0
    %538 = vmatprep.subr.mxu0 0.0
    %539 = vmatpush1.msra.mxu0 0.0
    %540 = vmatprep.subr.mxu0 0.0
    %541 = vmatpush1.msra.mxu0 0.0
    %542 = vmatprep.subr.mxu0 0.0
    %543 = vmatpush1.msra.mxu0 0.0
    %544 = vmatprep.subr.mxu0 0.0
    %545 = vmatpush1.msra.mxu0 0.0
    %546 = vmatprep.subr.mxu0 0.0
    %547 = vmatpush1.msra.mxu0 0.0
    %548 = vmatprep.subr.mxu0 0.0
    %549 = vmatpush1.msra.mxu0 0.0
    %550 = vmatprep.subr.mxu0 0.0
    %551 = vmatpush1.msra.mxu0 0.0
    %552 = vmatprep.subr.mxu0 0.0
    %553 = vmatpush1.msra.mxu0 0.0
    %554 = vmatprep.subr.mxu0 0.0
    %555 = vmatpush1.msra.mxu0 0.0
    %556 = vmatprep.subr.mxu0 0.0
    %557 = vmatpush1.msra.mxu0 0.0
    %558 = vmatprep.subr.mxu0 0.0
    %559 = vmatpush1.msra.mxu0 0.0
    %560 = vmatprep.subr.mxu0 0.0
    %561 = vmatpush1.msra.mxu0 0.0
    %562 = vmatprep.subr.mxu0 0.0
    %563 = vmatpush1.msra.mxu0 0.0
    %564 = vmatprep.subr.mxu0 0.0
    %565 = vmatpush1.msra.mxu0 0.0
    %566 = vmatprep.subr.mxu0 0.0
    %567 = vmatpush1.msra.mxu0 0.0
    %568 = vmatprep.mubr.f32.mxu0 0.0
    %569 = vmatmul.mubr.f32.gmra.mrb[0].mxu0 %v502
    %v570 = vpop.f32.mrb[0].mxu0
    %v571 = vadd.f32 %v499, %v570
    %v572 = vpop.f32.mrb[0].mxu0
    %573 = vdwg.mxu0
    %v574 = vld [vmem:[%s10] sm:$0xf]
    %v575 = vld [vmem:[%s11] sm:$0xf]
    %577 = vset.pattern.permute.xlu0 0
    %578 = vperm.xlu0 %577, %v575
    %v579 = vpop.permute.xlu0 %578
    %v582 = vsel %vm392, %v574, 0
    %584 = vmatprep.subr.mxu0 0.0
    %585 = vmatpush1.msra.mxu0 %v490
    %586 = vmatprep.subr.mxu0 0.0
    %587 = vmatpush1.msra.mxu0 %v491
    %588 = vmatprep.subr.mxu0 0.0
    %589 = vmatpush1.msra.mxu0 %v492
    %590 = vmatprep.subr.mxu0 0.0
    %591 = vmatpush1.msra.mxu0 %v493
    %592 = vmatprep.subr.mxu0 0.0
    %593 = vmatpush1.msra.mxu0 0.0
    %594 = vmatprep.subr.mxu0 0.0
    %595 = vmatpush1.msra.mxu0 0.0
    %596 = vmatprep.subr.mxu0 0.0
    %597 = vmatpush1.msra.mxu0 0.0
    %598 = vmatprep.subr.mxu0 0.0
    %599 = vmatpush1.msra.mxu0 0.0
    %600 = vmatprep.subr.mxu0 0.0
    %601 = vmatpush1.msra.mxu0 0.0
    %602 = vmatprep.subr.mxu0 0.0
    %603 = vmatpush1.msra.mxu0 0.0
    %604 = vmatprep.subr.mxu0 0.0
    %605 = vmatpush1.msra.mxu0 0.0
    %606 = vmatprep.subr.mxu0 0.0
    %607 = vmatpush1.msra.mxu0 0.0
    %608 = vmatprep.subr.mxu0 0.0
    %609 = vmatpush1.msra.mxu0 0.0
    %610 = vmatprep.subr.mxu0 0.0
    %611 = vmatpush1.msra.mxu0 0.0
    %612 = vmatprep.subr.mxu0 0.0
    %613 = vmatpush1.msra.mxu0 0.0
    %614 = vmatprep.subr.mxu0 0.0
    %615 = vmatpush1.msra.mxu0 0.0
    %616 = vmatprep.subr.mxu0 0.0
    %617 = vmatpush1.msra.mxu0 0.0
    %618 = vmatprep.subr.mxu0 0.0
    %619 = vmatpush1.msra.mxu0 0.0
    %620 = vmatprep.subr.mxu0 0.0
    %621 = vmatpush1.msra.mxu0 0.0
    %622 = vmatprep.subr.mxu0 0.0
    %623 = vmatpush1.msra.mxu0 0.0
    %624 = vmatprep.subr.mxu0 0.0
    %625 = vmatpush1.msra.mxu0 0.0
    %626 = vmatprep.subr.mxu0 0.0
    %627 = vmatpush1.msra.mxu0 0.0
    %628 = vmatprep.subr.mxu0 0.0
    %629 = vmatpush1.msra.mxu0 0.0
    %630 = vmatprep.subr.mxu0 0.0
    %631 = vmatpush1.msra.mxu0 0.0
    %632 = vmatprep.subr.mxu0 0.0
    %633 = vmatpush1.msra.mxu0 0.0
    %634 = vmatprep.subr.mxu0 0.0
    %635 = vmatpush1.msra.mxu0 0.0
    %636 = vmatprep.subr.mxu0 0.0
    %637 = vmatpush1.msra.mxu0 0.0
    %638 = vmatprep.subr.mxu0 0.0
    %639 = vmatpush1.msra.mxu0 0.0
    %640 = vmatprep.subr.mxu0 0.0
    %641 = vmatpush1.msra.mxu0 0.0
    %642 = vmatprep.subr.mxu0 0.0
    %643 = vmatpush1.msra.mxu0 0.0
    %644 = vmatprep.subr.mxu0 0.0
    %645 = vmatpush1.msra.mxu0 0.0
    %646 = vmatprep.subr.mxu0 0.0
    %647 = vmatpush1.msra.mxu0 0.0
    %648 = vmatprep.mubr.f32.mxu0 0.0
    %649 = vmatmul.mubr.f32.gmra.mrb[0].mxu0 %v582
    %v650 = vpop.f32.mrb[0].mxu0
    %v651 = vadd.f32 %v579, %v650
    %v652 = vpop.f32.mrb[0].mxu0
    %653 = vdwg.mxu0
    %v654 = vsub.f32 0.0, %v651
    %v655 = vmul.f32 %v654, %v651
    %v656 = vmul.f32 %v655, 1.442695
    %v657 = vpow.pop %v656
    %v658 = vsub.f32 1.0, %v657
    %v659 = vmul.f32 %v571, %v658
    %660 = vst [vmem:[#allocation2] sm:$0xf] %v659
    // Predicated region
    $region50: #{tpu_custom_call.1} parent=1 // pred_check
      _
    $region51: #{tpu_custom_call.1} parent=1 // pred_check_branch
      %662 = sbr.rel (0) target = $region53
    $region52: #{tpu_custom_call.1} parent=1 // pred_region
      %s664 = ssub.s32 64, 64
      %665 = vsyncadd [#allocation3], %s664
      %s667 = sshll.u32 [#allocation2], 4
      %s668 = int_to_ptr.vmem [resolvable:$true] %s667
      %670 = dma.vmem_to_hbm [thread:$0]  %s668, 64, %s12, [#allocation3]
    $region53: #{tpu_custom_call.1} parent=1 // pred_fallthru
      _
    // Predicated region
    $region54: #{tpu_custom_call.1} parent=1 // pred_check
      _
    $region55: #{tpu_custom_call.1} parent=1 // pred_check_branch
      %672 = sbr.rel (0) target = $region57
    $region56: #{tpu_custom_call.1} parent=1 // pred_region
      %673 = dma.done [#allocation3], 64
    $region57: #{tpu_custom_call.1} parent=1 // pred_fallthru
      _
    %674 = vsyncpa [#allocation3], 1

</llo_original>
